<compile_context>
chip_gen: v6e
topology: v6e:2x2x1
jax: 0.10.0
libtpu: 0.0.40
codegen_flags: <defaults>
</compile_context>

<pallas_src>
import functools

import jax
import jax.numpy as jnp
from jax.experimental import pallas as pl
from jax.experimental.pallas import tpu as pltpu


def _round_up(x: int, m: int) -> int:
    return ((x + m - 1) // m) * m


def _inner_product_decoder_kernel(zr_ref, zt_ref, o_ref):
    # zr_ref: (tm, D) row tile of z
    # zt_ref: (D, tn) column tile of z.T  (lane-dense along tn)
    s = jnp.dot(zr_ref[...], zt_ref[...], preferred_element_type=jnp.float32)
    # sigmoid(x) == 0.5 * tanh(0.5 * x) + 0.5  -> one EUP op + VPU filler.
    o_ref[...] = (0.5 * jnp.tanh(0.5 * s) + 0.5).astype(o_ref.dtype)


@functools.partial(jax.jit, static_argnames=("tm", "tn", "out_dtype", "compute_dtype"))
def inner_product_decode(z, *, tm=512, tn=2048, out_dtype=None, compute_dtype=None):
    """adj = sigmoid(z @ z.T) via a tiled, write-bandwidth-oriented Pallas kernel."""
    N, D = z.shape
    out_dtype = z.dtype if out_dtype is None else out_dtype
    if compute_dtype is not None:
        # Optional (e.g. bf16 on v5e to keep the MXU off the critical path).
        z = z.astype(compute_dtype)

    # Clamp tiles for small N while keeping (8, 128) alignment.
    tm_eff = _round_up(min(tm, _round_up(N, 8)), 8)
    tn_eff = _round_up(min(tn, _round_up(N, 128)), 128)

    np_rows = _round_up(N, tm_eff)
    np_cols = _round_up(N, tn_eff)

    # Row operand (N, D) padded along rows; column operand is z.T padded along cols.
    z_rows = z if np_rows == N else jnp.pad(z, ((0, np_rows - N), (0, 0)))
    z_t = z.T
    z_cols = z_t if np_cols == N else jnp.pad(z_t, ((0, 0), (0, np_cols - N)))

    grid = (np_rows // tm_eff, np_cols // tn_eff)

    # VMEM budget with lane/sublane padding, double-buffered tiles, + slack.
    in_bytes = jnp.dtype(z.dtype).itemsize
    out_bytes = jnp.dtype(out_dtype).itemsize
    d_lanes = _round_up(D, 128)   # (tm, D) block lane-pads D to 128 lanes
    d_sub = _round_up(D, 8)       # (D, tn) block sublane-pads D to 8 sublanes
    row_tile_b = tm_eff * d_lanes * in_bytes
    col_tile_b = d_sub * tn_eff * in_bytes
    out_tile_b = tm_eff * tn_eff * out_bytes
    vmem_needed = 2 * (row_tile_b + col_tile_b + out_tile_b) + (4 << 20)
    vmem_limit = int(max(vmem_needed, 32 << 20))  # never below the computed need

    # Row tiles are read once each; column tiles are re-read once per row stripe.
    cost = pl.CostEstimate(
        flops=2 * np_rows * np_cols * D,
        transcendentals=np_rows * np_cols,
        bytes_accessed=(np_rows * np_cols * out_bytes
                        + np_rows * D * in_bytes
                        + grid[0] * np_cols * D * in_bytes),
    )

    out = pl.pallas_call(
        _inner_product_decoder_kernel,
        out_shape=jax.ShapeDtypeStruct((np_rows, np_cols), out_dtype),
        grid_spec=pltpu.PrefetchScalarGridSpec(
            num_scalar_prefetch=0,
            grid=grid,
            in_specs=[
                # Row tile: block index constant along the inner (j) axis, so it
                # is only re-DMA'd when i changes.
                pl.BlockSpec((tm_eff, D), lambda i, j: (i, 0)),
                # Pre-transposed column tile: lane-dense along tn.
                pl.BlockSpec((D, tn_eff), lambda i, j: (0, j)),
            ],
            out_specs=pl.BlockSpec((tm_eff, tn_eff), lambda i, j: (i, j)),
        ),
        compiler_params=pltpu.CompilerParams(
            dimension_semantics=("parallel", "parallel"),
            vmem_limit_bytes=vmem_limit,
        ),
        cost_estimate=cost,
    )(z_rows, z_cols)

    return out[:N, :N]


def inner_product_decoder_forward(z, dropout=0.0, training=False, key=None,
                                  **kernel_kwargs):
    """Full forward pass matching the PyTorch InnerProductDecoder.

    Inverted dropout (like F.dropout) is applied to z in plain-JAX glue so the
    identical mask is seen by both operands of z @ z.T; the matmul + sigmoid
    hot path runs in the Pallas kernel.
    """
    if training and dropout > 0.0:
        assert key is not None
        keep = 1.0 - dropout
        mask = jax.random.bernoulli(key, p=keep, shape=z.shape)
        z = jnp.where(mask, z / keep, 0.0).astype(z.dtype)
    return inner_product_decode(z, **kernel_kwargs)


if __name__ == "__main__":
    D = 32  # latent dim

    # Case 1: tile-aligned N (eval-mode forward: dropout is identity).
    N1 = 256
    z1 = jax.random.normal(jax.random.PRNGKey(0), (N1, D), dtype=jnp.float32)
    adj1 = jax.block_until_ready(
        inner_product_decoder_forward(z1, dropout=0.5, training=False))
    ref1 = jax.nn.sigmoid(
        jnp.dot(z1, z1.T, precision=jax.lax.Precision.HIGHEST))
    assert adj1.shape == (N1, N1)
    assert jnp.allclose(adj1, ref1, atol=1e-4, rtol=1e-4), "mismatch (aligned N)"

    # Case 2: ragged N exercising the wrapper-side padding + slicing path.
    N2 = 200
    z2 = jax.random.normal(jax.random.PRNGKey(1), (N2, D), dtype=jnp.float32)
    adj2 = jax.block_until_ready(inner_product_decoder_forward(z2))
    ref2 = jax.nn.sigmoid(
        jnp.dot(z2, z2.T, precision=jax.lax.Precision.HIGHEST))
    assert adj2.shape == (N2, N2)
    assert jnp.allclose(adj2, ref2, atol=1e-4, rtol=1e-4), "mismatch (ragged N)"

    print("KERNEL_OK")
</pallas_src>

<mosaic_0001>
module attributes {stable_mosaic.version = 11 : i64} {
  func.func @_inner_product_decoder_kernel(%arg0: i32, %arg1: i32, %arg2: memref<256x32xf32, #tpu.memory_space<vmem>>, %arg3: memref<32x256xf32, #tpu.memory_space<vmem>>, %arg4: memref<256x256xf32, #tpu.memory_space<vmem>>) attributes {dimension_semantics = [#tpu.dimension_semantics<parallel>, #tpu.dimension_semantics<parallel>], iteration_bounds = array<i64: 1, 1>, scalar_prefetch = 0 : i64, scratch_operands = 0 : i64, tpu.core_type = #tpu.core_type<tc>, window_params = [{transform_indices = @transform_0, window_bounds = array<i64: 256, 32>}, {transform_indices = @transform_1, window_bounds = array<i64: 32, 256>}, {transform_indices = @transform_2, window_bounds = array<i64: 256, 256>}]} {
    %c0 = arith.constant 0 : index
    %c0_0 = arith.constant 0 : index
    %0 = vector.load %arg2[%c0, %c0_0] : memref<256x32xf32, #tpu.memory_space<vmem>>, vector<256x32xf32>
    %c0_1 = arith.constant 0 : index
    %c0_2 = arith.constant 0 : index
    %1 = vector.load %arg3[%c0_1, %c0_2] : memref<32x256xf32, #tpu.memory_space<vmem>>, vector<32x256xf32>
    %cst = arith.constant dense<0.000000e+00> : vector<256x256xf32>
    %2 = tpu.matmul %0, %1, %cst {dimension_numbers = #tpu.dot_dimension_numbers<[1], [0], [0], [1], [0, 0, 1, 1], [], []>} : vector<256x32xf32>, vector<32x256xf32>, vector<256x256xf32> -> vector<256x256xf32>
    %cst_3 = arith.constant 5.000000e-01 : f32
    %3 = vector.broadcast %cst_3 : f32 to vector<256x256xf32>
    %4 = arith.mulf %3, %2 : vector<256x256xf32>
    %5 = math.tanh %4 : vector<256x256xf32>
    %cst_4 = arith.constant 5.000000e-01 : f32
    %6 = vector.broadcast %cst_4 : f32 to vector<256x256xf32>
    %7 = arith.mulf %6, %5 : vector<256x256xf32>
    %cst_5 = arith.constant 5.000000e-01 : f32
    %8 = vector.broadcast %cst_5 : f32 to vector<256x256xf32>
    %9 = arith.addf %7, %8 : vector<256x256xf32>
    %c0_6 = arith.constant 0 : index
    %c0_7 = arith.constant 0 : index
    %10 = vector.load %arg4[%c0_6, %c0_7] : memref<256x256xf32, #tpu.memory_space<vmem>>, vector<256x256xf32>
    tpu.vector_store %arg4[%c0_6, %c0_7], %9 {strides = array<i32>} : memref<256x256xf32, #tpu.memory_space<vmem>>, vector<256x256xf32>,
    return
  }
  func.func @transform_0(%arg0: i32, %arg1: i32) -> (i32, i32) {
    %c0_i32 = arith.constant 0 : i32
    %c0_i32_0 = arith.constant 0 : i32
    return %arg0, %c0_i32 : i32, i32
  }
  func.func @transform_1(%arg0: i32, %arg1: i32) -> (i32, i32) {
    %c0_i32 = arith.constant 0 : i32
    %c0_i32_0 = arith.constant 0 : i32
    return %c0_i32, %arg1 : i32, i32
  }
  func.func @transform_2(%arg0: i32, %arg1: i32) -> (i32, i32) {
    %c0_i32 = arith.constant 0 : i32
    return %arg0, %arg1 : i32, i32
  }
}

</mosaic_0001>

<llo_original>
// kernel: inner_product_decode.1
$region0: #{inner_product_decode.1}
  #allocation0 [shape = 'u32[]', space=smem, size = 0x4, offset = 0x4, fixed_abs, tag = 'smem constant byte address 0x4 - core index']
  #allocation1 [shape = 'u32[144,128]{1,0:T(1,128)}', space=vmem, size = 0x12000, scoped, tag = 'internal scratch']
  %s0 = inlined_call_operand.vmem [shape: f32[256,32], index: 0, kind: input, shape index: {}]
  %s1 = inlined_call_operand.vmem [shape: f32[32,256], index: 1, kind: input, shape index: {}]
  %s2 = inlined_call_operand.hbm [shape: f32[256,256], index: 2, kind: output, shape index: {}]
  %s3 = sld [smem:[#allocation0]]
  $region18: #{inner_product_decode.1} parent=0
    _
  %s5 = ssub.s32 1, %s3
  %s6 = scalar_select 0, %s5, %s3
  $region1: #{inner_product_decode.1} parent=0
    #allocation2 [shape = 'u8[262144]{0}', space=vmem, size = 0x40000, scoped, tag = 'output window, operand 0, single buffered']
    #allocation3 [shape = 's32[1]{0}', space=sflag, size = 0x4, scoped, tag = 'scoped memory for inner_product_decode.1']
    %7 = vsyncpa [#allocation3], 0
    // Predicated region
    $region2: #{inner_product_decode.1} parent=1 // pred_check
      _
    $region3: #{inner_product_decode.1} parent=1 // pred_check_branch
      %9 = sbr.rel (0) target = $region5
    $region4: #{inner_product_decode.1} parent=1 // pred_region
      _
    $region5: #{inner_product_decode.1} parent=1 // pred_fallthru
      _
    // Predicated region
    $region6: #{inner_product_decode.1} parent=1 // pred_check
      _
    $region7: #{inner_product_decode.1} parent=1 // pred_check_branch
      %11 = sbr.rel (0) target = $region9
    $region8: #{inner_product_decode.1} parent=1 // pred_region
      _
    $region9: #{inner_product_decode.1} parent=1 // pred_fallthru
      _
    %v12 = vld [vmem:[%s0] sm:$0xff]
    %v13 = vld [vmem:[%s0 + $0x8] sm:$0xff]
    %v14 = vld [vmem:[%s0 + $0x10] sm:$0xff]
    %v15 = vld [vmem:[%s0 + $0x18] sm:$0xff]
    %v16 = vld [vmem:[%s0 + $0x20] sm:$0xff]
    %v17 = vld [vmem:[%s0 + $0x28] sm:$0xff]
    %v18 = vld [vmem:[%s0 + $0x30] sm:$0xff]
    %v19 = vld [vmem:[%s0 + $0x38] sm:$0xff]
    %v20 = vld [vmem:[%s0 + $0x40] sm:$0xff]
    %v21 = vld [vmem:[%s0 + $0x48] sm:$0xff]
    %v22 = vld [vmem:[%s0 + $0x50] sm:$0xff]
    %v23 = vld [vmem:[%s0 + $0x58] sm:$0xff]
    %v24 = vld [vmem:[%s0 + $0x60] sm:$0xff]
    %v25 = vld [vmem:[%s0 + $0x68] sm:$0xff]
    %v26 = vld [vmem:[%s0 + $0x70] sm:$0xff]
    %v27 = vld [vmem:[%s0 + $0x78] sm:$0xff]
    %v28 = vld [vmem:[%s0 + $0x80] sm:$0xff]
    %v29 = vld [vmem:[%s0 + $0x88] sm:$0xff]
    %v30 = vld [vmem:[%s0 + $0x90] sm:$0xff]
    %v31 = vld [vmem:[%s0 + $0x98] sm:$0xff]
    %v32 = vld [vmem:[%s0 + $0xa0] sm:$0xff]
    %v33 = vld [vmem:[%s0 + $0xa8] sm:$0xff]
    %v34 = vld [vmem:[%s0 + $0xb0] sm:$0xff]
    %v35 = vld [vmem:[%s0 + $0xb8] sm:$0xff]
    %v36 = vld [vmem:[%s0 + $0xc0] sm:$0xff]
    %v37 = vld [vmem:[%s0 + $0xc8] sm:$0xff]
    %v38 = vld [vmem:[%s0 + $0xd0] sm:$0xff]
    %v39 = vld [vmem:[%s0 + $0xd8] sm:$0xff]
    %v40 = vld [vmem:[%s0 + $0xe0] sm:$0xff]
    %v41 = vld [vmem:[%s0 + $0xe8] sm:$0xff]
    %v42 = vld [vmem:[%s0 + $0xf0] sm:$0xff]
    %v43 = vld [vmem:[%s0 + $0xf8] sm:$0xff]
    %v44 = vld [vmem:[%s1] sm:$0xff]
    %v45 = vld [vmem:[%s1 + $0x8] sm:$0xff]
    %v46 = vld [vmem:[%s1 + $0x10] sm:$0xff]
    %v47 = vld [vmem:[%s1 + $0x18] sm:$0xff]
    %v48 = vld [vmem:[%s1 + $0x20] sm:$0xff]
    %v49 = vld [vmem:[%s1 + $0x28] sm:$0xff]
    %v50 = vld [vmem:[%s1 + $0x30] sm:$0xff]
    %v51 = vld [vmem:[%s1 + $0x38] sm:$0xff]
    %vm52 = vcmask 261120
    %v54 = vsel %vm52, %v12, 0
    %v57 = vsel %vm52, %v13, 0
    %v60 = vsel %vm52, %v14, 0
    %v63 = vsel %vm52, %v15, 0
    %v66 = vsel %vm52, %v16, 0
    %v69 = vsel %vm52, %v17, 0
    %v72 = vsel %vm52, %v18, 0
    %v75 = vsel %vm52, %v19, 0
    %v78 = vsel %vm52, %v20, 0
    %v81 = vsel %vm52, %v21, 0
    %v84 = vsel %vm52, %v22, 0
    %v87 = vsel %vm52, %v23, 0
    %v90 = vsel %vm52, %v24, 0
    %v93 = vsel %vm52, %v25, 0
    %v96 = vsel %vm52, %v26, 0
    %v99 = vsel %vm52, %v27, 0
    %v102 = vsel %vm52, %v28, 0
    %v105 = vsel %vm52, %v29, 0
    %v108 = vsel %vm52, %v30, 0
    %v111 = vsel %vm52, %v31, 0
    %v114 = vsel %vm52, %v32, 0
    %v117 = vsel %vm52, %v33, 0
    %v120 = vsel %vm52, %v34, 0
    %v123 = vsel %vm52, %v35, 0
    %v126 = vsel %vm52, %v36, 0
    %v129 = vsel %vm52, %v37, 0
    %v132 = vsel %vm52, %v38, 0
    %v135 = vsel %vm52, %v39, 0
    %v138 = vsel %vm52, %v40, 0
    %v141 = vsel %vm52, %v41, 0
    %v144 = vsel %vm52, %v42, 0
    %v147 = vsel %vm52, %v43, 0
    %149 = vmatprep.subr.mxu0 0.0
    %150 = vmatpush1.msra.mxu0 0.0
    %151 = vmatprep.subr.mxu0 0.0
    %152 = vmatpush1.msra.mxu0 0.0
    %153 = vmatprep.subr.mxu0 0.0
    %154 = vmatpush1.msra.mxu0 0.0
    %155 = vmatprep.subr.mxu0 0.0
    %156 = vmatpush1.msra.mxu0 0.0
    %157 = vmatprep.subr.mxu0 0.0
    %158 = vmatpush1.msra.mxu0 0.0
    %159 = vmatprep.subr.mxu0 0.0
    %160 = vmatpush1.msra.mxu0 0.0
    %161 = vmatprep.subr.mxu0 0.0
    %162 = vmatpush1.msra.mxu0 0.0
    %163 = vmatprep.subr.mxu0 0.0
    %164 = vmatpush1.msra.mxu0 0.0
    %165 = vmatprep.subr.mxu0 0.0
    %166 = vmatpush1.msra.mxu0 0.0
    %167 = vmatprep.subr.mxu0 0.0
    %168 = vmatpush1.msra.mxu0 0.0
    %169 = vmatprep.subr.mxu0 0.0
    %170 = vmatpush1.msra.mxu0 0.0
    %171 = vmatprep.subr.mxu0 0.0
    %172 = vmatpush1.msra.mxu0 0.0
    %173 = vmatprep.subr.mxu0 %v51
    %174 = vmatpush1.msra.mxu0 %v50
    %175 = vmatprep.subr.mxu0 %v49
    %176 = vmatpush1.msra.mxu0 %v48
    %177 = vmatprep.subr.mxu0 %v47
    %178 = vmatpush1.msra.mxu0 %v46
    %179 = vmatprep.subr.mxu0 %v45
    %180 = vmatpush1.msra.mxu0 %v44
    %181 = vmatprep.subr.mxu0 0.0
    %182 = vmatpush2.msra.mxu0 0.0
    %183 = vmatprep.subr.mxu0 0.0
    %184 = vmatpush2.msra.mxu0 0.0
    %185 = vmatprep.subr.mxu0 0.0
    %186 = vmatpush2.msra.mxu0 0.0
    %187 = vmatprep.subr.mxu0 0.0
    %188 = vmatpush2.msra.mxu0 0.0
    %189 = vmatprep.subr.mxu0 0.0
    %190 = vmatpush2.msra.mxu0 0.0
    %191 = vmatprep.subr.mxu0 0.0
    %192 = vmatpush2.msra.mxu0 0.0
    %193 = vmatprep.subr.mxu0 0.0
    %194 = vmatpush2.msra.mxu0 0.0
    %195 = vmatprep.subr.mxu0 0.0
    %196 = vmatpush2.msra.mxu0 0.0
    %197 = vmatprep.subr.mxu0 0.0
    %198 = vmatpush2.msra.mxu0 0.0
    %199 = vmatprep.subr.mxu0 0.0
    %200 = vmatpush2.msra.mxu0 0.0
    %201 = vmatprep.subr.mxu0 0.0
    %202 = vmatpush2.msra.mxu0 0.0
    %203 = vmatprep.subr.mxu0 0.0
    %204 = vmatpush2.msra.mxu0 0.0
    %205 = vmatprep.subr.mxu0 0.0
    %206 = vmatpush2.msra.mxu0 0.0
    %207 = vmatprep.subr.mxu0 0.0
    %208 = vmatpush2.msra.mxu0 0.0
    %209 = vmatprep.subr.mxu0 0.0
    %210 = vmatpush2.msra.mxu0 0.0
    %211 = vmatprep.subr.mxu0 0.0
    %212 = vmatpush2.msra.mxu0 0.0
    %213 = vmatprep.mubr.f32.mxu0 0.0
    %214 = vmatmul.mubr.f32.gmra.mxu0 %v54
    %v215 = vpop.f32.mrf.mxu0
    %v216 = vadd.f32 0.0, %v215
    %v217 = vpop.f32.mrf.mxu0
    %v218 = vadd.f32 0.0, %v217
    %219 = vmatprep.mubr.f32.mxu0 0.0
    %220 = vmatmul.mubr.f32.gmra.mxu0 %v57
    %v221 = vpop.f32.mrf.mxu0
    %v222 = vadd.f32 0.0, %v221
    %v223 = vpop.f32.mrf.mxu0
    %v224 = vadd.f32 0.0, %v223
    %225 = vmatprep.mubr.f32.mxu0 0.0
    %226 = vmatmul.mubr.f32.gmra.mxu0 %v60
    %v227 = vpop.f32.mrf.mxu0
    %v228 = vadd.f32 0.0, %v227
    %v229 = vpop.f32.mrf.mxu0
    %v230 = vadd.f32 0.0, %v229
    %231 = vmatprep.mubr.f32.mxu0 0.0
    %232 = vmatmul.mubr.f32.gmra.mxu0 %v63
    %v233 = vpop.f32.mrf.mxu0
    %v234 = vadd.f32 0.0, %v233
    %v235 = vpop.f32.mrf.mxu0
    %v236 = vadd.f32 0.0, %v235
    %237 = vmatprep.mubr.f32.mxu0 0.0
    %238 = vmatmul.mubr.f32.gmra.mxu0 %v66
    %v239 = vpop.f32.mrf.mxu0
    %v240 = vadd.f32 0.0, %v239
    %v241 = vpop.f32.mrf.mxu0
    %v242 = vadd.f32 0.0, %v241
    %243 = vmatprep.mubr.f32.mxu0 0.0
    %244 = vmatmul.mubr.f32.gmra.mxu0 %v69
    %v245 = vpop.f32.mrf.mxu0
    %v246 = vadd.f32 0.0, %v245
    %v247 = vpop.f32.mrf.mxu0
    %v248 = vadd.f32 0.0, %v247
    %249 = vmatprep.mubr.f32.mxu0 0.0
    %250 = vmatmul.mubr.f32.gmra.mxu0 %v72
    %v251 = vpop.f32.mrf.mxu0
    %v252 = vadd.f32 0.0, %v251
    %v253 = vpop.f32.mrf.mxu0
    %v254 = vadd.f32 0.0, %v253
    %255 = vmatprep.mubr.f32.mxu0 0.0
    %256 = vmatmul.mubr.f32.gmra.mxu0 %v75
    %v257 = vpop.f32.mrf.mxu0
    %v258 = vadd.f32 0.0, %v257
    %v259 = vpop.f32.mrf.mxu0
    %v260 = vadd.f32 0.0, %v259
    %261 = vmatprep.mubr.f32.mxu0 0.0
    %262 = vmatmul.mubr.f32.gmra.mxu0 %v78
    %v263 = vpop.f32.mrf.mxu0
    %v264 = vadd.f32 0.0, %v263
    %v265 = vpop.f32.mrf.mxu0
    %v266 = vadd.f32 0.0, %v265
    %267 = vmatprep.mubr.f32.mxu0 0.0
    %268 = vmatmul.mubr.f32.gmra.mxu0 %v81
    %v269 = vpop.f32.mrf.mxu0
    %v270 = vadd.f32 0.0, %v269
    %v271 = vpop.f32.mrf.mxu0
    %v272 = vadd.f32 0.0, %v271
    %273 = vmatprep.mubr.f32.mxu0 0.0
    %274 = vmatmul.mubr.f32.gmra.mxu0 %v84
    %v275 = vpop.f32.mrf.mxu0
    %v276 = vadd.f32 0.0, %v275
    %v277 = vpop.f32.mrf.mxu0
    %v278 = vadd.f32 0.0, %v277
    %279 = vmatprep.mubr.f32.mxu0 0.0
    %280 = vmatmul.mubr.f32.gmra.mxu0 %v87
    %v281 = vpop.f32.mrf.mxu0
    %v282 = vadd.f32 0.0, %v281
    %v283 = vpop.f32.mrf.mxu0
    %v284 = vadd.f32 0.0, %v283
    %285 = vmatprep.mubr.f32.mxu0 0.0
    %286 = vmatmul.mubr.f32.gmra.mxu0 %v90
    %v287 = vpop.f32.mrf.mxu0
    %v288 = vadd.f32 0.0, %v287
    %v289 = vpop.f32.mrf.mxu0
    %v290 = vadd.f32 0.0, %v289
    %291 = vmatprep.mubr.f32.mxu0 0.0
    %292 = vmatmul.mubr.f32.gmra.mxu0 %v93
    %v293 = vpop.f32.mrf.mxu0
    %v294 = vadd.f32 0.0, %v293
    %v295 = vpop.f32.mrf.mxu0
    %v296 = vadd.f32 0.0, %v295
    %297 = vmatprep.mubr.f32.mxu0 0.0
    %298 = vmatmul.mubr.f32.gmra.mxu0 %v96
    %v299 = vpop.f32.mrf.mxu0
    %v300 = vadd.f32 0.0, %v299
    %v301 = vpop.f32.mrf.mxu0
    %v302 = vadd.f32 0.0, %v301
    %303 = vmatprep.mubr.f32.mxu0 0.0
    %304 = vmatmul.mubr.f32.gmra.mxu0 %v99
    %v305 = vpop.f32.mrf.mxu0
    %v306 = vadd.f32 0.0, %v305
    %v307 = vpop.f32.mrf.mxu0
    %v308 = vadd.f32 0.0, %v307
    %309 = vmatprep.mubr.f32.mxu0 0.0
    %310 = vmatmul.mubr.f32.gmra.mxu0 %v102
    %v311 = vpop.f32.mrf.mxu0
    %v312 = vadd.f32 0.0, %v311
    %v313 = vpop.f32.mrf.mxu0
    %v314 = vadd.f32 0.0, %v313
    %315 = vmatprep.mubr.f32.mxu0 0.0
    %316 = vmatmul.mubr.f32.gmra.mxu0 %v105
    %v317 = vpop.f32.mrf.mxu0
    %v318 = vadd.f32 0.0, %v317
    %v319 = vpop.f32.mrf.mxu0
    %v320 = vadd.f32 0.0, %v319
    %321 = vmatprep.mubr.f32.mxu0 0.0
    %322 = vmatmul.mubr.f32.gmra.mxu0 %v108
    %v323 = vpop.f32.mrf.mxu0
    %v324 = vadd.f32 0.0, %v323
    %v325 = vpop.f32.mrf.mxu0
    %v326 = vadd.f32 0.0, %v325
    %327 = vmatprep.mubr.f32.mxu0 0.0
    %328 = vmatmul.mubr.f32.gmra.mxu0 %v111
    %v329 = vpop.f32.mrf.mxu0
    %v330 = vadd.f32 0.0, %v329
    %v331 = vpop.f32.mrf.mxu0
    %v332 = vadd.f32 0.0, %v331
    %333 = vmatprep.mubr.f32.mxu0 0.0
    %334 = vmatmul.mubr.f32.gmra.mxu0 %v114
    %v335 = vpop.f32.mrf.mxu0
    %v336 = vadd.f32 0.0, %v335
    %v337 = vpop.f32.mrf.mxu0
    %v338 = vadd.f32 0.0, %v337
    %339 = vmatprep.mubr.f32.mxu0 0.0
    %340 = vmatmul.mubr.f32.gmra.mxu0 %v117
    %v341 = vpop.f32.mrf.mxu0
    %v342 = vadd.f32 0.0, %v341
    %v343 = vpop.f32.mrf.mxu0
    %v344 = vadd.f32 0.0, %v343
    %345 = vmatprep.mubr.f32.mxu0 0.0
    %346 = vmatmul.mubr.f32.gmra.mxu0 %v120
    %v347 = vpop.f32.mrf.mxu0
    %v348 = vadd.f32 0.0, %v347
    %v349 = vpop.f32.mrf.mxu0
    %v350 = vadd.f32 0.0, %v349
    %351 = vmatprep.mubr.f32.mxu0 0.0
    %352 = vmatmul.mubr.f32.gmra.mxu0 %v123
    %v353 = vpop.f32.mrf.mxu0
    %v354 = vadd.f32 0.0, %v353
    %v355 = vpop.f32.mrf.mxu0
    %v356 = vadd.f32 0.0, %v355
    %357 = vmatprep.mubr.f32.mxu0 0.0
    %358 = vmatmul.mubr.f32.gmra.mxu0 %v126
    %v359 = vpop.f32.mrf.mxu0
    %v360 = vadd.f32 0.0, %v359
    %v361 = vpop.f32.mrf.mxu0
    %v362 = vadd.f32 0.0, %v361
    %363 = vmatprep.mubr.f32.mxu0 0.0
    %364 = vmatmul.mubr.f32.gmra.mxu0 %v129
    %v365 = vpop.f32.mrf.mxu0
    %v366 = vadd.f32 0.0, %v365
    %v367 = vpop.f32.mrf.mxu0
    %v368 = vadd.f32 0.0, %v367
    %369 = vmatprep.mubr.f32.mxu0 0.0
    %370 = vmatmul.mubr.f32.gmra.mxu0 %v132
    %v371 = vpop.f32.mrf.mxu0
    %v372 = vadd.f32 0.0, %v371
    %v373 = vpop.f32.mrf.mxu0
    %v374 = vadd.f32 0.0, %v373
    %375 = vmatprep.mubr.f32.mxu0 0.0
    %376 = vmatmul.mubr.f32.gmra.mxu0 %v135
    %v377 = vpop.f32.mrf.mxu0
    %v378 = vadd.f32 0.0, %v377
    %v379 = vpop.f32.mrf.mxu0
    %v380 = vadd.f32 0.0, %v379
    %381 = vmatprep.mubr.f32.mxu0 0.0
    %382 = vmatmul.mubr.f32.gmra.mxu0 %v138
    %v383 = vpop.f32.mrf.mxu0
    %v384 = vadd.f32 0.0, %v383
    %v385 = vpop.f32.mrf.mxu0
    %v386 = vadd.f32 0.0, %v385
    %387 = vmatprep.mubr.f32.mxu0 0.0
    %388 = vmatmul.mubr.f32.gmra.mxu0 %v141
    %v389 = vpop.f32.mrf.mxu0
    %v390 = vadd.f32 0.0, %v389
    %v391 = vpop.f32.mrf.mxu0
    %v392 = vadd.f32 0.0, %v391
    %393 = vmatprep.mubr.f32.mxu0 0.0
    %394 = vmatmul.mubr.f32.gmra.mxu0 %v144
    %v395 = vpop.f32.mrf.mxu0
    %v396 = vadd.f32 0.0, %v395
    %v397 = vpop.f32.mrf.mxu0
    %v398 = vadd.f32 0.0, %v397
    %399 = vmatprep.mubr.f32.mxu0 0.0
    %400 = vmatmul.mubr.f32.gmra.mxu0 %v147
    %v401 = vpop.f32.mrf.mxu0
    %v402 = vadd.f32 0.0, %v401
    %v403 = vpop.f32.mrf.mxu0
    %v404 = vadd.f32 0.0, %v403
    %405 = vdwg.mxu0
    %v406 = vmul.f32 %v216, 0.5
    %v407 = vmul.f32 %v218, 0.5
    %v408 = vmul.f32 %v222, 0.5
    %v409 = vmul.f32 %v224, 0.5
    %v410 = vmul.f32 %v228, 0.5
    %v411 = vmul.f32 %v230, 0.5
    %v412 = vmul.f32 %v234, 0.5
    %v413 = vmul.f32 %v236, 0.5
    %v414 = vmul.f32 %v240, 0.5
    %v415 = vmul.f32 %v242, 0.5
    %v416 = vmul.f32 %v246, 0.5
    %v417 = vmul.f32 %v248, 0.5
    %v418 = vmul.f32 %v252, 0.5
    %v419 = vmul.f32 %v254, 0.5
    %v420 = vmul.f32 %v258, 0.5
    %v421 = vmul.f32 %v260, 0.5
    %v422 = vmul.f32 %v264, 0.5
    %v423 = vmul.f32 %v266, 0.5
    %v424 = vmul.f32 %v270, 0.5
    %v425 = vmul.f32 %v272, 0.5
    %v426 = vmul.f32 %v276, 0.5
    %v427 = vmul.f32 %v278, 0.5
    %v428 = vmul.f32 %v282, 0.5
    %v429 = vmul.f32 %v284, 0.5
    %v430 = vmul.f32 %v288, 0.5
    %v431 = vmul.f32 %v290, 0.5
    %v432 = vmul.f32 %v294, 0.5
    %v433 = vmul.f32 %v296, 0.5
    %v434 = vmul.f32 %v300, 0.5
    %v435 = vmul.f32 %v302, 0.5
    %v436 = vmul.f32 %v306, 0.5
    %v437 = vmul.f32 %v308, 0.5
    %v438 = vmul.f32 %v312, 0.5
    %v439 = vmul.f32 %v314, 0.5
    %v440 = vmul.f32 %v318, 0.5
    %v441 = vmul.f32 %v320, 0.5
    %v442 = vmul.f32 %v324, 0.5
    %v443 = vmul.f32 %v326, 0.5
    %v444 = vmul.f32 %v330, 0.5
    %v445 = vmul.f32 %v332, 0.5
    %v446 = vmul.f32 %v336, 0.5
    %v447 = vmul.f32 %v338, 0.5
    %v448 = vmul.f32 %v342, 0.5
    %v449 = vmul.f32 %v344, 0.5
    %v450 = vmul.f32 %v348, 0.5
    %v451 = vmul.f32 %v350, 0.5
    %v452 = vmul.f32 %v354, 0.5
    %v453 = vmul.f32 %v356, 0.5
    %v454 = vmul.f32 %v360, 0.5
    %v455 = vmul.f32 %v362, 0.5
    %v456 = vmul.f32 %v366, 0.5
    %v457 = vmul.f32 %v368, 0.5
    %v458 = vmul.f32 %v372, 0.5
    %v459 = vmul.f32 %v374, 0.5
    %v460 = vmul.f32 %v378, 0.5
    %v461 = vmul.f32 %v380, 0.5
    %v462 = vmul.f32 %v384, 0.5
    %v463 = vmul.f32 %v386, 0.5
    %v464 = vmul.f32 %v390, 0.5
    %v465 = vmul.f32 %v392, 0.5
    %v466 = vmul.f32 %v396, 0.5
    %v467 = vmul.f32 %v398, 0.5
    %v468 = vmul.f32 %v402, 0.5
    %v469 = vmul.f32 %v404, 0.5
    %v470 = vtanh.pop %v406
    %v471 = vtanh.pop %v407
    %v472 = vtanh.pop %v408
    %v473 = vtanh.pop %v409
    %v474 = vtanh.pop %v410
    %v475 = vtanh.pop %v411
    %v476 = vtanh.pop %v412
    %v477 = vtanh.pop %v413
    %v478 = vtanh.pop %v414
    %v479 = vtanh.pop %v415
    %v480 = vtanh.pop %v416
    %v481 = vtanh.pop %v417
    %v482 = vtanh.pop %v418
    %v483 = vtanh.pop %v419
    %v484 = vtanh.pop %v420
    %v485 = vtanh.pop %v421
    %v486 = vtanh.pop %v422
    %v487 = vtanh.pop %v423
    %v488 = vtanh.pop %v424
    %v489 = vtanh.pop %v425
    %v490 = vtanh.pop %v426
    %v491 = vtanh.pop %v427
    %v492 = vtanh.pop %v428
    %v493 = vtanh.pop %v429
    %v494 = vtanh.pop %v430
    %v495 = vtanh.pop %v431
    %v496 = vtanh.pop %v432
    %v497 = vtanh.pop %v433
    %v498 = vtanh.pop %v434
    %v499 = vtanh.pop %v435
    %v500 = vtanh.pop %v436
    %v501 = vtanh.pop %v437
    %v502 = vtanh.pop %v438
    %v503 = vtanh.pop %v439
    %v504 = vtanh.pop %v440
    %v505 = vtanh.pop %v441
    %v506 = vtanh.pop %v442
    %v507 = vtanh.pop %v443
    %v508 = vtanh.pop %v444
    %v509 = vtanh.pop %v445
    %v510 = vtanh.pop %v446
    %v511 = vtanh.pop %v447
    %v512 = vtanh.pop %v448
    %v513 = vtanh.pop %v449
    %v514 = vtanh.pop %v450
    %v515 = vtanh.pop %v451
    %v516 = vtanh.pop %v452
    %v517 = vtanh.pop %v453
    %v518 = vtanh.pop %v454
    %v519 = vtanh.pop %v455
    %v520 = vtanh.pop %v456
    %v521 = vtanh.pop %v457
    %v522 = vtanh.pop %v458
    %v523 = vtanh.pop %v459
    %v524 = vtanh.pop %v460
    %v525 = vtanh.pop %v461
    %v526 = vtanh.pop %v462
    %v527 = vtanh.pop %v463
    %v528 = vtanh.pop %v464
    %v529 = vtanh.pop %v465
    %v530 = vtanh.pop %v466
    %v531 = vtanh.pop %v467
    %v532 = vtanh.pop %v468
    %v533 = vtanh.pop %v469
    %v534 = vmul.f32 %v470, 0.5
    %v535 = vmul.f32 %v471, 0.5
    %v536 = vmul.f32 %v472, 0.5
    %v537 = vmul.f32 %v473, 0.5
    %v538 = vmul.f32 %v474, 0.5
    %v539 = vmul.f32 %v475, 0.5
    %v540 = vmul.f32 %v476, 0.5
    %v541 = vmul.f32 %v477, 0.5
    %v542 = vmul.f32 %v478, 0.5
    %v543 = vmul.f32 %v479, 0.5
    %v544 = vmul.f32 %v480, 0.5
    %v545 = vmul.f32 %v481, 0.5
    %v546 = vmul.f32 %v482, 0.5
    %v547 = vmul.f32 %v483, 0.5
    %v548 = vmul.f32 %v484, 0.5
    %v549 = vmul.f32 %v485, 0.5
    %v550 = vmul.f32 %v486, 0.5
    %v551 = vmul.f32 %v487, 0.5
    %v552 = vmul.f32 %v488, 0.5
    %v553 = vmul.f32 %v489, 0.5
    %v554 = vmul.f32 %v490, 0.5
    %v555 = vmul.f32 %v491, 0.5
    %v556 = vmul.f32 %v492, 0.5
    %v557 = vmul.f32 %v493, 0.5
    %v558 = vmul.f32 %v494, 0.5
    %v559 = vmul.f32 %v495, 0.5
    %v560 = vmul.f32 %v496, 0.5
    %v561 = vmul.f32 %v497, 0.5
    %v562 = vmul.f32 %v498, 0.5
    %v563 = vmul.f32 %v499, 0.5
    %v564 = vmul.f32 %v500, 0.5
    %v565 = vmul.f32 %v501, 0.5
    %v566 = vmul.f32 %v502, 0.5
    %v567 = vmul.f32 %v503, 0.5
    %v568 = vmul.f32 %v504, 0.5
    %v569 = vmul.f32 %v505, 0.5
    %v570 = vmul.f32 %v506, 0.5
    %v571 = vmul.f32 %v507, 0.5
    %v572 = vmul.f32 %v508, 0.5
    %v573 = vmul.f32 %v509, 0.5
    %v574 = vmul.f32 %v510, 0.5
    %v575 = vmul.f32 %v511, 0.5
    %v576 = vmul.f32 %v512, 0.5
    %v577 = vmul.f32 %v513, 0.5
    %v578 = vmul.f32 %v514, 0.5
    %v579 = vmul.f32 %v515, 0.5
    %v580 = vmul.f32 %v516, 0.5
    %v581 = vmul.f32 %v517, 0.5
    %v582 = vmul.f32 %v518, 0.5
    %v583 = vmul.f32 %v519, 0.5
    %v584 = vmul.f32 %v520, 0.5
    %v585 = vmul.f32 %v521, 0.5
    %v586 = vmul.f32 %v522, 0.5
    %v587 = vmul.f32 %v523, 0.5
    %v588 = vmul.f32 %v524, 0.5
    %v589 = vmul.f32 %v525, 0.5
    %v590 = vmul.f32 %v526, 0.5
    %v591 = vmul.f32 %v527, 0.5
    %v592 = vmul.f32 %v528, 0.5
    %v593 = vmul.f32 %v529, 0.5
    %v594 = vmul.f32 %v530, 0.5
    %v595 = vmul.f32 %v531, 0.5
    %v596 = vmul.f32 %v532, 0.5
    %v597 = vmul.f32 %v533, 0.5
    %v598 = vadd.f32 %v534, 0.5
    %v599 = vadd.f32 %v535, 0.5
    %v600 = vadd.f32 %v536, 0.5
    %v601 = vadd.f32 %v537, 0.5
    %v602 = vadd.f32 %v538, 0.5
    %v603 = vadd.f32 %v539, 0.5
    %v604 = vadd.f32 %v540, 0.5
    %v605 = vadd.f32 %v541, 0.5
    %v606 = vadd.f32 %v542, 0.5
    %v607 = vadd.f32 %v543, 0.5
    %v608 = vadd.f32 %v544, 0.5
    %v609 = vadd.f32 %v545, 0.5
    %v610 = vadd.f32 %v546, 0.5
    %v611 = vadd.f32 %v547, 0.5
    %v612 = vadd.f32 %v548, 0.5
    %v613 = vadd.f32 %v549, 0.5
    %v614 = vadd.f32 %v550, 0.5
    %v615 = vadd.f32 %v551, 0.5
    %v616 = vadd.f32 %v552, 0.5
    %v617 = vadd.f32 %v553, 0.5
    %v618 = vadd.f32 %v554, 0.5
    %v619 = vadd.f32 %v555, 0.5
    %v620 = vadd.f32 %v556, 0.5
    %v621 = vadd.f32 %v557, 0.5
    %v622 = vadd.f32 %v558, 0.5
    %v623 = vadd.f32 %v559, 0.5
    %v624 = vadd.f32 %v560, 0.5
    %v625 = vadd.f32 %v561, 0.5
    %v626 = vadd.f32 %v562, 0.5
    %v627 = vadd.f32 %v563, 0.5
    %v628 = vadd.f32 %v564, 0.5
    %v629 = vadd.f32 %v565, 0.5
    %v630 = vadd.f32 %v566, 0.5
    %v631 = vadd.f32 %v567, 0.5
    %v632 = vadd.f32 %v568, 0.5
    %v633 = vadd.f32 %v569, 0.5
    %v634 = vadd.f32 %v570, 0.5
    %v635 = vadd.f32 %v571, 0.5
    %v636 = vadd.f32 %v572, 0.5
    %v637 = vadd.f32 %v573, 0.5
    %v638 = vadd.f32 %v574, 0.5
    %v639 = vadd.f32 %v575, 0.5
    %v640 = vadd.f32 %v576, 0.5
    %v641 = vadd.f32 %v577, 0.5
    %v642 = vadd.f32 %v578, 0.5
    %v643 = vadd.f32 %v579, 0.5
    %v644 = vadd.f32 %v580, 0.5
    %v645 = vadd.f32 %v581, 0.5
    %v646 = vadd.f32 %v582, 0.5
    %v647 = vadd.f32 %v583, 0.5
    %v648 = vadd.f32 %v584, 0.5
    %v649 = vadd.f32 %v585, 0.5
    %v650 = vadd.f32 %v586, 0.5
    %v651 = vadd.f32 %v587, 0.5
    %v652 = vadd.f32 %v588, 0.5
    %v653 = vadd.f32 %v589, 0.5
    %v654 = vadd.f32 %v590, 0.5
    %v655 = vadd.f32 %v591, 0.5
    %v656 = vadd.f32 %v592, 0.5
    %v657 = vadd.f32 %v593, 0.5
    %v658 = vadd.f32 %v594, 0.5
    %v659 = vadd.f32 %v595, 0.5
    %v660 = vadd.f32 %v596, 0.5
    %v661 = vadd.f32 %v597, 0.5
    %662 = vst [vmem:[#allocation2] sm:$0xff] %v598
    %663 = vst [vmem:[#allocation2 + $0x8] sm:$0xff] %v599
    %664 = vst [vmem:[#allocation2 + $0x10] sm:$0xff] %v600
    %665 = vst [vmem:[#allocation2 + $0x18] sm:$0xff] %v601
    %666 = vst [vmem:[#allocation2 + $0x20] sm:$0xff] %v602
    %667 = vst [vmem:[#allocation2 + $0x28] sm:$0xff] %v603
    %668 = vst [vmem:[#allocation2 + $0x30] sm:$0xff] %v604
    %669 = vst [vmem:[#allocation2 + $0x38] sm:$0xff] %v605
    %670 = vst [vmem:[#allocation2 + $0x40] sm:$0xff] %v606
    %671 = vst [vmem:[#allocation2 + $0x48] sm:$0xff] %v607
    %672 = vst [vmem:[#allocation2 + $0x50] sm:$0xff] %v608
    %673 = vst [vmem:[#allocation2 + $0x58] sm:$0xff] %v609
    %674 = vst [vmem:[#allocation2 + $0x60] sm:$0xff] %v610
    %675 = vst [vmem:[#allocation2 + $0x68] sm:$0xff] %v611
    %676 = vst [vmem:[#allocation2 + $0x70] sm:$0xff] %v612
    %677 = vst [vmem:[#allocation2 + $0x78] sm:$0xff] %v613
    %678 = vst [vmem:[#allocation2 + $0x80] sm:$0xff] %v614
    %679 = vst [vmem:[#allocation2 + $0x88] sm:$0xff] %v615
    %680 = vst [vmem:[#allocation2 + $0x90] sm:$0xff] %v616
    %681 = vst [vmem:[#allocation2 + $0x98] sm:$0xff] %v617
    %682 = vst [vmem:[#allocation2 + $0xa0] sm:$0xff] %v618
    %683 = vst [vmem:[#allocation2 + $0xa8] sm:$0xff] %v619
    %684 = vst [vmem:[#allocation2 + $0xb0] sm:$0xff] %v620
    %685 = vst [vmem:[#allocation2 + $0xb8] sm:$0xff] %v621
    %686 = vst [vmem:[#allocation2 + $0xc0] sm:$0xff] %v622
    %687 = vst [vmem:[#allocation2 + $0xc8] sm:$0xff] %v623
    %688 = vst [vmem:[#allocation2 + $0xd0] sm:$0xff] %v624
    %689 = vst [vmem:[#allocation2 + $0xd8] sm:$0xff] %v625
    %690 = vst [vmem:[#allocation2 + $0xe0] sm:$0xff] %v626
    %691 = vst [vmem:[#allocation2 + $0xe8] sm:$0xff] %v627
    %692 = vst [vmem:[#allocation2 + $0xf0] sm:$0xff] %v628
    %693 = vst [vmem:[#allocation2 + $0xf8] sm:$0xff] %v629
    %694 = vst [vmem:[#allocation2 + $0x100] sm:$0xff] %v630
    %695 = vst [vmem:[#allocation2 + $0x108] sm:$0xff] %v631
    %696 = vst [vmem:[#allocation2 + $0x110] sm:$0xff] %v632
    %697 = vst [vmem:[#allocation2 + $0x118] sm:$0xff] %v633
    %698 = vst [vmem:[#allocation2 + $0x120] sm:$0xff] %v634
    %699 = vst [vmem:[#allocation2 + $0x128] sm:$0xff] %v635
    %700 = vst [vmem:[#allocation2 + $0x130] sm:$0xff] %v636
    %701 = vst [vmem:[#allocation2 + $0x138] sm:$0xff] %v637
    %702 = vst [vmem:[#allocation2 + $0x140] sm:$0xff] %v638
    %703 = vst [vmem:[#allocation2 + $0x148] sm:$0xff] %v639
    %704 = vst [vmem:[#allocation2 + $0x150] sm:$0xff] %v640
    %705 = vst [vmem:[#allocation2 + $0x158] sm:$0xff] %v641
    %706 = vst [vmem:[#allocation2 + $0x160] sm:$0xff] %v642
    %707 = vst [vmem:[#allocation2 + $0x168] sm:$0xff] %v643
    %708 = vst [vmem:[#allocation2 + $0x170] sm:$0xff] %v644
    %709 = vst [vmem:[#allocation2 + $0x178] sm:$0xff] %v645
    %710 = vst [vmem:[#allocation2 + $0x180] sm:$0xff] %v646
    %711 = vst [vmem:[#allocation2 + $0x188] sm:$0xff] %v647
    %712 = vst [vmem:[#allocation2 + $0x190] sm:$0xff] %v648
    %713 = vst [vmem:[#allocation2 + $0x198] sm:$0xff] %v649
    %714 = vst [vmem:[#allocation2 + $0x1a0] sm:$0xff] %v650
    %715 = vst [vmem:[#allocation2 + $0x1a8] sm:$0xff] %v651
    %716 = vst [vmem:[#allocation2 + $0x1b0] sm:$0xff] %v652
    %717 = vst [vmem:[#allocation2 + $0x1b8] sm:$0xff] %v653
    %718 = vst [vmem:[#allocation2 + $0x1c0] sm:$0xff] %v654
    %719 = vst [vmem:[#allocation2 + $0x1c8] sm:$0xff] %v655
    %720 = vst [vmem:[#allocation2 + $0x1d0] sm:$0xff] %v656
    %721 = vst [vmem:[#allocation2 + $0x1d8] sm:$0xff] %v657
    %722 = vst [vmem:[#allocation2 + $0x1e0] sm:$0xff] %v658
    %723 = vst [vmem:[#allocation2 + $0x1e8] sm:$0xff] %v659
    %724 = vst [vmem:[#allocation2 + $0x1f0] sm:$0xff] %v660
    %725 = vst [vmem:[#allocation2 + $0x1f8] sm:$0xff] %v661
    // Predicated region
    $region10: #{inner_product_decode.1} parent=1 // pred_check
      _
    $region11: #{inner_product_decode.1} parent=1 // pred_check_branch
      %727 = sbr.rel (0) target = $region13
    $region12: #{inner_product_decode.1} parent=1 // pred_region
      %s729 = ssub.s32 8192, 8192
      %730 = vsyncadd [#allocation3], %s729
      %s731 = sshll.u32 [#allocation2], 4
      %s732 = int_to_ptr.vmem [resolvable:$true] %s731
      %737 = dma.vmem_to_hbm [thread:$0]  %s732, 8192, %s2, [#allocation3], 256, 256, 16
    $region13: #{inner_product_decode.1} parent=1 // pred_fallthru
      _
    // Predicated region
    $region14: #{inner_product_decode.1} parent=1 // pred_check
      _
    $region15: #{inner_product_decode.1} parent=1 // pred_check_branch
      %739 = sbr.rel (0) target = $region17
    $region16: #{inner_product_decode.1} parent=1 // pred_region
      %740 = dma.done [#allocation3], 8192
    $region17: #{inner_product_decode.1} parent=1 // pred_fallthru
      _
    %741 = vsyncpa [#allocation3], 1

</llo_original>
